<compile_context>
chip_gen: v5e
topology: v5e:2x2
jax: 0.10.0
libtpu: 0.0.40
codegen_flags: <defaults>
</compile_context>

<pallas_src>
import jax
import jax.numpy as jnp
from jax import lax
from jax.experimental import pallas as pl
from jax.experimental.pallas import tpu as pltpu

BN_EPS = 1e-5
HIDDEN = 32
MAX_TILE_L = 8192          # lanes per tile along L
MAX_TILE_B = 8             # batch rows grouped per step when L fits in one tile
MAX_TILE_POSITIONS = 32768  # cap on tile_b * L positions per step


def _pick_tiles(n, length):
    """(tile_b, tile_l): tile_l is a multiple-of-128 divisor of L (capped) or the
    full L; tile_b groups batch rows only when the whole L fits in one tile."""
    if length % 128 == 0:
        tile_l = min(length, MAX_TILE_L)
        while length % tile_l != 0:
            tile_l -= 128
    else:
        tile_l = length  # full-extent block is always legal
    tile_b = 1
    if tile_l == length:
        for cand in range(min(n, MAX_TILE_B), 0, -1):
            if n % cand == 0 and cand * length <= MAX_TILE_POSITIONS:
                tile_b = cand
                break
    return tile_b, tile_l


def _make_kernel(tile_b, inv_m):
    """Fused two-phase kernel.  Phase 0 accumulates per-channel sum / sum-of-squares
    of h = W1 x + b1; at the phase transition BN is folded into (w1c, b1c);
    phase 1 computes W2 relu(w1c x + b1c) + b2 and stores it."""

    def kernel(x_ref, w1t_ref, b1_ref, gamma_ref, beta_ref, w2t_ref, b2_ref,
               o_ref, w1c_ref, b1c_ref, sum_ref, ssq_ref):
        phase = pl.program_id(0)
        first = (pl.program_id(1) == 0) & (pl.program_id(2) == 0)

        @pl.when((phase == 0) & first)
        def _():
            w1c_ref[...] = w1t_ref[...]
            b1c_ref[...] = b1_ref[...]
            sum_ref[...] = jnp.zeros_like(sum_ref)
            ssq_ref[...] = jnp.zeros_like(ssq_ref)

        @pl.when((phase == 1) & first)
        def _():
            # Fold train-mode BatchNorm (biased batch variance) into conv1.
            mean = sum_ref[...] * inv_m
            var = jnp.maximum(ssq_ref[...] * inv_m - mean * mean, 0.0)
            scale = gamma_ref[...] * lax.rsqrt(var + BN_EPS)
            w1c_ref[...] = w1t_ref[...] * scale
            b1c_ref[...] = (b1_ref[...] - mean) * scale + beta_ref[...]

        w1c = w1c_ref[...]
        b1c = b1c_ref[...]

        @pl.when(phase == 0)
        def _():
            s = sum_ref[...]
            q = ssq_ref[...]
            for bb in range(tile_b):  # statically unrolled, tile_b <= 8
                h = jnp.dot(w1c, x_ref[bb],
                            preferred_element_type=jnp.float32) + b1c
                s = s + jnp.sum(h, axis=1, keepdims=True)
                q = q + jnp.sum(h * h, axis=1, keepdims=True)
            sum_ref[...] = s
            ssq_ref[...] = q

        @pl.when(phase == 1)
        def _():
            w2t = w2t_ref[...]
            b2 = b2_ref[...]
            for bb in range(tile_b):
                h = jnp.dot(w1c, x_ref[bb],
                            preferred_element_type=jnp.float32) + b1c
                a = jnp.maximum(h, 0.0)
                o_ref[bb] = (jnp.dot(w2t, a, preferred_element_type=jnp.float32)
                             + b2).astype(o_ref.dtype)

    return kernel


def event_data_cnn_deconv(x_ncl, params):
    """x_ncl: (N, C_in, L) float32.  Returns (N, C_out, L) float32."""
    w1t, b1, gamma, beta, w2t, b2 = params
    n, c_in, length = x_ncl.shape
    c_out = w2t.shape[0]
    tile_b, tile_l = _pick_tiles(n, length)
    n_b = n // tile_b
    n_l = length // tile_l
    inv_m = 1.0 / float(n * length)

    x_spec = pl.BlockSpec((tile_b, c_in, tile_l), lambda p, b, l: (b, 0, l))
    # During phase 0 the (unwritten) output maps to block (0,0,0); phase 1 then
    # starts at the same block and writes every block exactly once -> no
    # redundant HBM writeback during the statistics sweep.
    out_spec = pl.BlockSpec((tile_b, c_out, tile_l),
                            lambda p, b, l: (p * b, 0, p * l))
    const = lambda shape: pl.BlockSpec(shape, lambda p, b, l: (0, 0))

    return pl.pallas_call(
        _make_kernel(tile_b, inv_m),
        out_shape=jax.ShapeDtypeStruct((n, c_out, length), jnp.float32),
        grid_spec=pltpu.PrefetchScalarGridSpec(
            num_scalar_prefetch=0,
            grid=(2, n_b, n_l),
            in_specs=[x_spec,
                      const((HIDDEN, c_in)), const((HIDDEN, 1)),
                      const((HIDDEN, 1)), const((HIDDEN, 1)),
                      const((c_out, HIDDEN)), const((c_out, 1))],
            out_specs=out_spec,
            scratch_shapes=[pltpu.VMEM((HIDDEN, c_in), jnp.float32),  # folded W1
                            pltpu.VMEM((HIDDEN, 1), jnp.float32),     # folded b1
                            pltpu.VMEM((HIDDEN, 1), jnp.float32),     # sum
                            pltpu.VMEM((HIDDEN, 1), jnp.float32)]),   # sum of squares
        compiler_params=pltpu.CompilerParams(
            dimension_semantics=("arbitrary", "arbitrary", "arbitrary")),
    )(x_ncl, w1t, b1, gamma, beta, w2t, b2)


def init_params(key, c_in, c_out):
    """Deterministic synthetic params in the (C, ...) 'channels-on-sublanes' layout.

      w1t: (32, C_in)   (PyTorch Conv1d weight (32, C_in, 1) squeezed)
      b1 : (32, 1)
      w2t: (C_out, 32)  (PyTorch Conv1d weight (C_out, 32, 1) squeezed)
      b2 : (C_out, 1)
      BatchNorm: gamma=1, beta=0 (PyTorch defaults).
    """
    k1, k2, k3, k4 = jax.random.split(key, 4)
    s1 = 1.0 / jnp.sqrt(jnp.float32(c_in))
    s2 = 1.0 / jnp.sqrt(jnp.float32(HIDDEN))
    w1t = jax.random.uniform(k1, (HIDDEN, c_in), jnp.float32, -s1, s1)
    b1 = jax.random.uniform(k2, (HIDDEN, 1), jnp.float32, -s1, s1)
    w2t = jax.random.uniform(k3, (c_out, HIDDEN), jnp.float32, -s2, s2)
    b2 = jax.random.uniform(k4, (c_out, 1), jnp.float32, -s2, s2)
    gamma = jnp.ones((HIDDEN, 1), jnp.float32)
    beta = jnp.zeros((HIDDEN, 1), jnp.float32)
    return w1t, b1, gamma, beta, w2t, b2


def _reference(x_ncl, params):
    """Pure-JAX reference of the PyTorch forward (training-mode BN)."""
    w1t, b1, gamma, beta, w2t, b2 = params
    n, c_in, length = x_ncl.shape
    x2d = jnp.transpose(x_ncl, (0, 2, 1)).reshape(n * length, c_in)
    h = x2d @ w1t.T + b1[:, 0]
    mean = jnp.mean(h, axis=0, keepdims=True)
    var = jnp.mean((h - mean) ** 2, axis=0, keepdims=True)
    h = (h - mean) / jnp.sqrt(var + BN_EPS) * gamma[:, 0] + beta[:, 0]
    h = jnp.maximum(h, 0.0)
    out = h @ w2t.T + b2[:, 0]
    return jnp.transpose(out.reshape(n, length, -1), (0, 2, 1))


if __name__ == "__main__":
    key = jax.random.PRNGKey(0)
    kx, kp = jax.random.split(key)

    N, C_IN, L, C_OUT = 2, 4, 16, 6
    x = jax.random.normal(kx, (N, C_IN, L), jnp.float32)
    params = init_params(kp, C_IN, C_OUT)

    out = jax.block_until_ready(event_data_cnn_deconv(x, params))

    ref = _reference(x, params)
    assert out.shape == (N, C_OUT, L), out.shape
    assert jnp.allclose(out, ref, atol=1e-4, rtol=1e-4), "mismatch vs reference"

    print("KERNEL_OK")
</pallas_src>

<mosaic_0001>
module attributes {stable_mosaic.version = 11 : i64} {
  func.func @kernel(%arg0: i32, %arg1: i32, %arg2: i32, %arg3: memref<2x4x16xf32, #tpu.memory_space<vmem>>, %arg4: memref<32x4xf32, #tpu.memory_space<vmem>>, %arg5: memref<32x1xf32, #tpu.memory_space<vmem>>, %arg6: memref<32x1xf32, #tpu.memory_space<vmem>>, %arg7: memref<32x1xf32, #tpu.memory_space<vmem>>, %arg8: memref<6x32xf32, #tpu.memory_space<vmem>>, %arg9: memref<6x1xf32, #tpu.memory_space<vmem>>, %arg10: memref<2x6x16xf32, #tpu.memory_space<vmem>>, %arg11: memref<32x4xf32, #tpu.memory_space<vmem>>, %arg12: memref<32x1xf32, #tpu.memory_space<vmem>>, %arg13: memref<32x1xf32, #tpu.memory_space<vmem>>, %arg14: memref<32x1xf32, #tpu.memory_space<vmem>>) attributes {dimension_semantics = [#tpu.dimension_semantics<arbitrary>, #tpu.dimension_semantics<arbitrary>, #tpu.dimension_semantics<arbitrary>], iteration_bounds = array<i64: 2, 1, 1>, scalar_prefetch = 0 : i64, scratch_operands = 4 : i64, tpu.core_type = #tpu.core_type<tc>, window_params = [{transform_indices = @transform_0, window_bounds = array<i64: 2, 4, 16>}, {pipeline_mode = #tpu.pipeline_mode<synchronous>, transform_indices = @transform_1, window_bounds = array<i64: 32, 4>}, {pipeline_mode = #tpu.pipeline_mode<synchronous>, transform_indices = @transform_2, window_bounds = array<i64: 32, 1>}, {pipeline_mode = #tpu.pipeline_mode<synchronous>, transform_indices = @transform_3, window_bounds = array<i64: 32, 1>}, {pipeline_mode = #tpu.pipeline_mode<synchronous>, transform_indices = @transform_4, window_bounds = array<i64: 32, 1>}, {pipeline_mode = #tpu.pipeline_mode<synchronous>, transform_indices = @transform_5, window_bounds = array<i64: 6, 32>}, {pipeline_mode = #tpu.pipeline_mode<synchronous>, transform_indices = @transform_6, window_bounds = array<i64: 6, 1>}, {transform_indices = @transform_7, window_bounds = array<i64: 2, 6, 16>}]} {
    %c0_i32 = arith.constant 0 : i32
    %0 = arith.cmpi eq, %arg1, %c0_i32 : i32
    %c0_i32_0 = arith.constant 0 : i32
    %1 = arith.cmpi eq, %arg2, %c0_i32_0 : i32
    %2 = arith.andi %0, %1 : i1
    %c0_i32_1 = arith.constant 0 : i32
    %3 = arith.cmpi eq, %arg0, %c0_i32_1 : i32
    %4 = arith.andi %3, %2 : i1
    %5 = arith.extui %4 : i1 to i32
    %c0_i32_2 = arith.constant 0 : i32
    %6 = arith.cmpi ne, %5, %c0_i32_2 : i32
    scf.if %6 {
      %c0_11 = arith.constant 0 : index
      %c0_12 = arith.constant 0 : index
      %19 = vector.load %arg4[%c0_11, %c0_12] : memref<32x4xf32, #tpu.memory_space<vmem>>, vector<32x4xf32>
      %c0_13 = arith.constant 0 : index
      %c0_14 = arith.constant 0 : index
      %20 = vector.load %arg11[%c0_13, %c0_14] : memref<32x4xf32, #tpu.memory_space<vmem>>, vector<32x4xf32>
      tpu.vector_store %arg11[%c0_13, %c0_14], %19 {strides = array<i32>} : memref<32x4xf32, #tpu.memory_space<vmem>>, vector<32x4xf32>,
      %c0_15 = arith.constant 0 : index
      %c0_16 = arith.constant 0 : index
      %21 = vector.load %arg5[%c0_15, %c0_16] : memref<32x1xf32, #tpu.memory_space<vmem>>, vector<32x1xf32>
      %c0_17 = arith.constant 0 : index
      %c0_18 = arith.constant 0 : index
      %22 = vector.load %arg12[%c0_17, %c0_18] : memref<32x1xf32, #tpu.memory_space<vmem>>, vector<32x1xf32>
      tpu.vector_store %arg12[%c0_17, %c0_18], %21 {strides = array<i32>} : memref<32x1xf32, #tpu.memory_space<vmem>>, vector<32x1xf32>,
      %cst = arith.constant 0.000000e+00 : f32
      %23 = vector.broadcast %cst : f32 to vector<32x1xf32>
      %c0_19 = arith.constant 0 : index
      %c0_20 = arith.constant 0 : index
      %24 = vector.load %arg13[%c0_19, %c0_20] : memref<32x1xf32, #tpu.memory_space<vmem>>, vector<32x1xf32>
      tpu.vector_store %arg13[%c0_19, %c0_20], %23 {strides = array<i32>} : memref<32x1xf32, #tpu.memory_space<vmem>>, vector<32x1xf32>,
      %cst_21 = arith.constant 0.000000e+00 : f32
      %25 = vector.broadcast %cst_21 : f32 to vector<32x1xf32>
      %c0_22 = arith.constant 0 : index
      %c0_23 = arith.constant 0 : index
      %26 = vector.load %arg14[%c0_22, %c0_23] : memref<32x1xf32, #tpu.memory_space<vmem>>, vector<32x1xf32>
      tpu.vector_store %arg14[%c0_22, %c0_23], %25 {strides = array<i32>} : memref<32x1xf32, #tpu.memory_space<vmem>>, vector<32x1xf32>,
    } else {
    }
    %c1_i32 = arith.constant 1 : i32
    %7 = arith.cmpi eq, %arg0, %c1_i32 : i32
    %8 = arith.andi %7, %2 : i1
    %9 = arith.extui %8 : i1 to i32
    %c0_i32_3 = arith.constant 0 : i32
    %10 = arith.cmpi ne, %9, %c0_i32_3 : i32
    scf.if %10 {
      %c0_11 = arith.constant 0 : index
      %c0_12 = arith.constant 0 : index
      %19 = vector.load %arg13[%c0_11, %c0_12] : memref<32x1xf32, #tpu.memory_space<vmem>>, vector<32x1xf32>
      %cst = arith.constant 3.125000e-02 : f32
      %20 = vector.broadcast %cst : f32 to vector<32x1xf32>
      %21 = arith.mulf %19, %20 : vector<32x1xf32>
      %c0_13 = arith.constant 0 : index
      %c0_14 = arith.constant 0 : index
      %22 = vector.load %arg14[%c0_13, %c0_14] : memref<32x1xf32, #tpu.memory_space<vmem>>, vector<32x1xf32>
      %cst_15 = arith.constant 3.125000e-02 : f32
      %23 = vector.broadcast %cst_15 : f32 to vector<32x1xf32>
      %24 = arith.mulf %22, %23 : vector<32x1xf32>
      %25 = arith.mulf %21, %21 : vector<32x1xf32>
      %26 = arith.subf %24, %25 : vector<32x1xf32>
      %cst_16 = arith.constant 0.000000e+00 : f32
      %27 = vector.broadcast %cst_16 : f32 to vector<32x1xf32>
      %28 = arith.maximumf %26, %27 : vector<32x1xf32>
      %c0_17 = arith.constant 0 : index
      %c0_18 = arith.constant 0 : index
      %29 = vector.load %arg6[%c0_17, %c0_18] : memref<32x1xf32, #tpu.memory_space<vmem>>, vector<32x1xf32>
      %cst_19 = arith.constant 9.99999974E-6 : f32
      %30 = vector.broadcast %cst_19 : f32 to vector<32x1xf32>
      %31 = arith.addf %28, %30 : vector<32x1xf32>
      %32 = math.rsqrt %31 : vector<32x1xf32>
      %33 = arith.mulf %29, %32 : vector<32x1xf32>
      %c0_20 = arith.constant 0 : index
      %c0_21 = arith.constant 0 : index
      %34 = vector.load %arg4[%c0_20, %c0_21] : memref<32x4xf32, #tpu.memory_space<vmem>>, vector<32x4xf32>
      %35 = vector.broadcast %33 : vector<32x1xf32> to vector<32x4xf32>
      %36 = arith.mulf %34, %35 : vector<32x4xf32>
      %c0_22 = arith.constant 0 : index
      %c0_23 = arith.constant 0 : index
      %37 = vector.load %arg11[%c0_22, %c0_23] : memref<32x4xf32, #tpu.memory_space<vmem>>, vector<32x4xf32>
      tpu.vector_store %arg11[%c0_22, %c0_23], %36 {strides = array<i32>} : memref<32x4xf32, #tpu.memory_space<vmem>>, vector<32x4xf32>,
      %c0_24 = arith.constant 0 : index
      %c0_25 = arith.constant 0 : index
      %38 = vector.load %arg5[%c0_24, %c0_25] : memref<32x1xf32, #tpu.memory_space<vmem>>, vector<32x1xf32>
      %39 = arith.subf %38, %21 : vector<32x1xf32>
      %40 = arith.mulf %39, %33 : vector<32x1xf32>
      %c0_26 = arith.constant 0 : index
      %c0_27 = arith.constant 0 : index
      %41 = vector.load %arg7[%c0_26, %c0_27] : memref<32x1xf32, #tpu.memory_space<vmem>>, vector<32x1xf32>
      %42 = arith.addf %40, %41 : vector<32x1xf32>
      %c0_28 = arith.constant 0 : index
      %c0_29 = arith.constant 0 : index
      %43 = vector.load %arg12[%c0_28, %c0_29] : memref<32x1xf32, #tpu.memory_space<vmem>>, vector<32x1xf32>
      tpu.vector_store %arg12[%c0_28, %c0_29], %42 {strides = array<i32>} : memref<32x1xf32, #tpu.memory_space<vmem>>, vector<32x1xf32>,
    } else {
    }
    %c0 = arith.constant 0 : index
    %c0_4 = arith.constant 0 : index
    %11 = vector.load %arg11[%c0, %c0_4] : memref<32x4xf32, #tpu.memory_space<vmem>>, vector<32x4xf32>
    %c0_5 = arith.constant 0 : index
    %c0_6 = arith.constant 0 : index
    %12 = vector.load %arg12[%c0_5, %c0_6] : memref<32x1xf32, #tpu.memory_space<vmem>>, vector<32x1xf32>
    %c0_i32_7 = arith.constant 0 : i32
    %13 = arith.cmpi eq, %arg0, %c0_i32_7 : i32
    %14 = arith.extui %13 : i1 to i32
    %c0_i32_8 = arith.constant 0 : i32
    %15 = arith.cmpi ne, %14, %c0_i32_8 : i32
    scf.if %15 {
      %c0_11 = arith.constant 0 : index
      %c0_12 = arith.constant 0 : index
      %19 = vector.load %arg13[%c0_11, %c0_12] : memref<32x1xf32, #tpu.memory_space<vmem>>, vector<32x1xf32>
      %c0_13 = arith.constant 0 : index
      %c0_14 = arith.constant 0 : index
      %20 = vector.load %arg14[%c0_13, %c0_14] : memref<32x1xf32, #tpu.memory_space<vmem>>, vector<32x1xf32>
      %c0_15 = arith.constant 0 : index
      %c0_16 = arith.constant 0 : index
      %c0_17 = arith.constant 0 : index
      %21 = vector.load %arg3[%c0_15, %c0_16, %c0_17] : memref<2x4x16xf32, #tpu.memory_space<vmem>>, vector<1x4x16xf32>
      %22 = vector.shape_cast %21 : vector<1x4x16xf32> to vector<4x16xf32>
      %cst = arith.constant dense<0.000000e+00> : vector<32x16xf32>
      %23 = tpu.matmul %11, %22, %cst {dimension_numbers = #tpu.dot_dimension_numbers<[1], [0], [0], [1], [0, 0, 1, 1], [], []>} : vector<32x4xf32>, vector<4x16xf32>, vector<32x16xf32> -> vector<32x16xf32>
      %24 = vector.broadcast %12 : vector<32x1xf32> to vector<32x16xf32>
      %25 = arith.addf %23, %24 : vector<32x16xf32>
      %cst_18 = arith.constant dense<0.000000e+00> : vector<32xf32>
      %26 = vector.multi_reduction <add>, %25, %cst_18 [1] : vector<32x16xf32> to vector<32xf32>
      %27 = vector.shape_cast %26 : vector<32xf32> to vector<32x1xf32>
      %28 = arith.addf %19, %27 : vector<32x1xf32>
      %29 = arith.mulf %25, %25 : vector<32x16xf32>
      %cst_19 = arith.constant dense<0.000000e+00> : vector<32xf32>
      %30 = vector.multi_reduction <add>, %29, %cst_19 [1] : vector<32x16xf32> to vector<32xf32>
      %31 = vector.shape_cast %30 : vector<32xf32> to vector<32x1xf32>
      %32 = arith.addf %20, %31 : vector<32x1xf32>
      %c1 = arith.constant 1 : index
      %c0_20 = arith.constant 0 : index
      %c0_21 = arith.constant 0 : index
      %33 = vector.load %arg3[%c1, %c0_20, %c0_21] : memref<2x4x16xf32, #tpu.memory_space<vmem>>, vector<1x4x16xf32>
      %34 = vector.shape_cast %33 : vector<1x4x16xf32> to vector<4x16xf32>
      %cst_22 = arith.constant dense<0.000000e+00> : vector<32x16xf32>
      %35 = tpu.matmul %11, %34, %cst_22 {dimension_numbers = #tpu.dot_dimension_numbers<[1], [0], [0], [1], [0, 0, 1, 1], [], []>} : vector<32x4xf32>, vector<4x16xf32>, vector<32x16xf32> -> vector<32x16xf32>
      %36 = vector.broadcast %12 : vector<32x1xf32> to vector<32x16xf32>
      %37 = arith.addf %35, %36 : vector<32x16xf32>
      %cst_23 = arith.constant dense<0.000000e+00> : vector<32xf32>
      %38 = vector.multi_reduction <add>, %37, %cst_23 [1] : vector<32x16xf32> to vector<32xf32>
      %39 = vector.shape_cast %38 : vector<32xf32> to vector<32x1xf32>
      %40 = arith.addf %28, %39 : vector<32x1xf32>
      %41 = arith.mulf %37, %37 : vector<32x16xf32>
      %cst_24 = arith.constant dense<0.000000e+00> : vector<32xf32>
      %42 = vector.multi_reduction <add>, %41, %cst_24 [1] : vector<32x16xf32> to vector<32xf32>
      %43 = vector.shape_cast %42 : vector<32xf32> to vector<32x1xf32>
      %44 = arith.addf %32, %43 : vector<32x1xf32>
      %c0_25 = arith.constant 0 : index
      %c0_26 = arith.constant 0 : index
      %45 = vector.load %arg13[%c0_25, %c0_26] : memref<32x1xf32, #tpu.memory_space<vmem>>, vector<32x1xf32>
      tpu.vector_store %arg13[%c0_25, %c0_26], %40 {strides = array<i32>} : memref<32x1xf32, #tpu.memory_space<vmem>>, vector<32x1xf32>,
      %c0_27 = arith.constant 0 : index
      %c0_28 = arith.constant 0 : index
      %46 = vector.load %arg14[%c0_27, %c0_28] : memref<32x1xf32, #tpu.memory_space<vmem>>, vector<32x1xf32>
      tpu.vector_store %arg14[%c0_27, %c0_28], %44 {strides = array<i32>} : memref<32x1xf32, #tpu.memory_space<vmem>>, vector<32x1xf32>,
    } else {
    }
    %c1_i32_9 = arith.constant 1 : i32
    %16 = arith.cmpi eq, %arg0, %c1_i32_9 : i32
    %17 = arith.extui %16 : i1 to i32
    %c0_i32_10 = arith.constant 0 : i32
    %18 = arith.cmpi ne, %17, %c0_i32_10 : i32
    scf.if %18 {
      %c0_11 = arith.constant 0 : index
      %c0_12 = arith.constant 0 : index
      %19 = vector.load %arg8[%c0_11, %c0_12] : memref<6x32xf32, #tpu.memory_space<vmem>>, vector<6x32xf32>
      %c0_13 = arith.constant 0 : index
      %c0_14 = arith.constant 0 : index
      %20 = vector.load %arg9[%c0_13, %c0_14] : memref<6x1xf32, #tpu.memory_space<vmem>>, vector<6x1xf32>
      %c0_15 = arith.constant 0 : index
      %c0_16 = arith.constant 0 : index
      %c0_17 = arith.constant 0 : index
      %21 = vector.load %arg3[%c0_15, %c0_16, %c0_17] : memref<2x4x16xf32, #tpu.memory_space<vmem>>, vector<1x4x16xf32>
      %22 = vector.shape_cast %21 : vector<1x4x16xf32> to vector<4x16xf32>
      %cst = arith.constant dense<0.000000e+00> : vector<32x16xf32>
      %23 = tpu.matmul %11, %22, %cst {dimension_numbers = #tpu.dot_dimension_numbers<[1], [0], [0], [1], [0, 0, 1, 1], [], []>} : vector<32x4xf32>, vector<4x16xf32>, vector<32x16xf32> -> vector<32x16xf32>
      %24 = vector.broadcast %12 : vector<32x1xf32> to vector<32x16xf32>
      %25 = arith.addf %23, %24 : vector<32x16xf32>
      %cst_18 = arith.constant 0.000000e+00 : f32
      %26 = vector.broadcast %cst_18 : f32 to vector<32x16xf32>
      %27 = arith.maximumf %25, %26 : vector<32x16xf32>
      %cst_19 = arith.constant dense<0.000000e+00> : vector<6x16xf32>
      %28 = tpu.matmul %19, %27, %cst_19 {dimension_numbers = #tpu.dot_dimension_numbers<[1], [0], [0], [1], [0, 0, 1, 1], [], []>} : vector<6x32xf32>, vector<32x16xf32>, vector<6x16xf32> -> vector<6x16xf32>
      %29 = vector.broadcast %20 : vector<6x1xf32> to vector<6x16xf32>
      %30 = arith.addf %28, %29 : vector<6x16xf32>
      %c0_20 = arith.constant 0 : index
      %c0_21 = arith.constant 0 : index
      %c0_22 = arith.constant 0 : index
      %31 = vector.load %arg10[%c0_20, %c0_21, %c0_22] : memref<2x6x16xf32, #tpu.memory_space<vmem>>, vector<1x6x16xf32>
      %32 = vector.shape_cast %31 : vector<1x6x16xf32> to vector<6x16xf32>
      %33 = vector.shape_cast %30 : vector<6x16xf32> to vector<1x6x16xf32>
      tpu.vector_store %arg10[%c0_20, %c0_21, %c0_22], %33 {strides = array<i32>} : memref<2x6x16xf32, #tpu.memory_space<vmem>>, vector<1x6x16xf32>,
      %c1 = arith.constant 1 : index
      %c0_23 = arith.constant 0 : index
      %c0_24 = arith.constant 0 : index
      %34 = vector.load %arg3[%c1, %c0_23, %c0_24] : memref<2x4x16xf32, #tpu.memory_space<vmem>>, vector<1x4x16xf32>
      %35 = vector.shape_cast %34 : vector<1x4x16xf32> to vector<4x16xf32>
      %cst_25 = arith.constant dense<0.000000e+00> : vector<32x16xf32>
      %36 = tpu.matmul %11, %35, %cst_25 {dimension_numbers = #tpu.dot_dimension_numbers<[1], [0], [0], [1], [0, 0, 1, 1], [], []>} : vector<32x4xf32>, vector<4x16xf32>, vector<32x16xf32> -> vector<32x16xf32>
      %37 = vector.broadcast %12 : vector<32x1xf32> to vector<32x16xf32>
      %38 = arith.addf %36, %37 : vector<32x16xf32>
      %cst_26 = arith.constant 0.000000e+00 : f32
      %39 = vector.broadcast %cst_26 : f32 to vector<32x16xf32>
      %40 = arith.maximumf %38, %39 : vector<32x16xf32>
      %cst_27 = arith.constant dense<0.000000e+00> : vector<6x16xf32>
      %41 = tpu.matmul %19, %40, %cst_27 {dimension_numbers = #tpu.dot_dimension_numbers<[1], [0], [0], [1], [0, 0, 1, 1], [], []>} : vector<6x32xf32>, vector<32x16xf32>, vector<6x16xf32> -> vector<6x16xf32>
      %42 = vector.broadcast %20 : vector<6x1xf32> to vector<6x16xf32>
      %43 = arith.addf %41, %42 : vector<6x16xf32>
      %c1_28 = arith.constant 1 : index
      %c0_29 = arith.constant 0 : index
      %c0_30 = arith.constant 0 : index
      %44 = vector.load %arg10[%c1_28, %c0_29, %c0_30] : memref<2x6x16xf32, #tpu.memory_space<vmem>>, vector<1x6x16xf32>
      %45 = vector.shape_cast %44 : vector<1x6x16xf32> to vector<6x16xf32>
      %46 = vector.shape_cast %43 : vector<6x16xf32> to vector<1x6x16xf32>
      tpu.vector_store %arg10[%c1_28, %c0_29, %c0_30], %46 {strides = array<i32>} : memref<2x6x16xf32, #tpu.memory_space<vmem>>, vector<1x6x16xf32>,
    } else {
    }
    return
  }
  func.func @transform_0(%arg0: i32, %arg1: i32, %arg2: i32) -> (i32, i32, i32) {
    %c0_i32 = arith.constant 0 : i32
    %c0_i32_0 = arith.constant 0 : i32
    return %arg1, %c0_i32, %arg2 : i32, i32, i32
  }
  func.func @transform_1(%arg0: i32, %arg1: i32, %arg2: i32) -> (i32, i32) {
    %c0_i32 = arith.constant 0 : i32
    %c0_i32_0 = arith.constant 0 : i32
    %c0_i32_1 = arith.constant 0 : i32
    return %c0_i32, %c0_i32_0 : i32, i32
  }
  func.func @transform_2(%arg0: i32, %arg1: i32, %arg2: i32) -> (i32, i32) {
    %c0_i32 = arith.constant 0 : i32
    %c0_i32_0 = arith.constant 0 : i32
    %c0_i32_1 = arith.constant 0 : i32
    return %c0_i32, %c0_i32_0 : i32, i32
  }
  func.func @transform_3(%arg0: i32, %arg1: i32, %arg2: i32) -> (i32, i32) {
    %c0_i32 = arith.constant 0 : i32
    %c0_i32_0 = arith.constant 0 : i32
    %c0_i32_1 = arith.constant 0 : i32
    return %c0_i32, %c0_i32_0 : i32, i32
  }
  func.func @transform_4(%arg0: i32, %arg1: i32, %arg2: i32) -> (i32, i32) {
    %c0_i32 = arith.constant 0 : i32
    %c0_i32_0 = arith.constant 0 : i32
    %c0_i32_1 = arith.constant 0 : i32
    return %c0_i32, %c0_i32_0 : i32, i32
  }
  func.func @transform_5(%arg0: i32, %arg1: i32, %arg2: i32) -> (i32, i32) {
    %c0_i32 = arith.constant 0 : i32
    %c0_i32_0 = arith.constant 0 : i32
    %c0_i32_1 = arith.constant 0 : i32
    return %c0_i32, %c0_i32_0 : i32, i32
  }
  func.func @transform_6(%arg0: i32, %arg1: i32, %arg2: i32) -> (i32, i32) {
    %c0_i32 = arith.constant 0 : i32
    %c0_i32_0 = arith.constant 0 : i32
    %c0_i32_1 = arith.constant 0 : i32
    return %c0_i32, %c0_i32_0 : i32, i32
  }
  func.func @transform_7(%arg0: i32, %arg1: i32, %arg2: i32) -> (i32, i32, i32) {
    %0 = arith.muli %arg0, %arg1 : i32
    %1 = arith.muli %arg0, %arg2 : i32
    %c0_i32 = arith.constant 0 : i32
    %c0_i32_0 = arith.constant 0 : i32
    return %0, %c0_i32, %1 : i32, i32, i32
  }
}

</mosaic_0001>

<llo_original>
// kernel: tpu_custom_call.1
$region0: #{tpu_custom_call.1}
  #allocation0 [shape = 'u32[]', space=smem, size = 0x4, offset = 0x4, fixed_abs, tag = 'smem constant byte address 0x4 - core index']
  #allocation1 [shape = 'u32[72,128]{1,0:T(1,128)}', space=vmem, size = 0x9000, scoped, tag = 'internal scratch']
  #allocation2 [shape = 'f32[32,4]{1,0:T(8,128)}', space=vmem, size = 0x4000, scoped, tag = 'scratch operand']
  #allocation3 [shape = 'f32[32,1]{1,0:T(8,128)}', space=vmem, size = 0x4000, scoped, tag = 'scratch operand']
  #allocation4 [shape = 'f32[32,1]{1,0:T(8,128)}', space=vmem, size = 0x4000, scoped, tag = 'scratch operand']
  #allocation5 [shape = 'f32[32,1]{1,0:T(8,128)}', space=vmem, size = 0x4000, scoped, tag = 'scratch operand']
  %s0 = inlined_call_operand.vmem [shape: f32[2,4,16], index: 0, kind: input, shape index: {}]
  %s1 = inlined_call_operand.vmem [shape: f32[32,4], index: 1, kind: input, shape index: {}]
  %s2 = inlined_call_operand.vmem [shape: f32[32,1], index: 2, kind: input, shape index: {}]
  %s3 = inlined_call_operand.vmem [shape: f32[32,1], index: 3, kind: input, shape index: {}]
  %s4 = inlined_call_operand.vmem [shape: f32[32,1], index: 4, kind: input, shape index: {}]
  %s5 = inlined_call_operand.vmem [shape: f32[6,32], index: 5, kind: input, shape index: {}]
  %s6 = inlined_call_operand.vmem [shape: f32[6,1], index: 6, kind: input, shape index: {}]
  %s7 = inlined_call_operand.vmem [shape: f32[2,6,16], index: 7, kind: output, shape index: {}]
  %s8 = sld [smem:[#allocation0]]
  $region77: #{tpu_custom_call.1} parent=0
    _
  %s10 = ssub.s32 1, %s8
  %s11 = scalar_select 0, %s10, %s8
  loop: start=0, step=1, limit=4
  $region2: #{tpu_custom_call.1} parent=0 // loop_pre_header
    _
  $region3: #{tpu_custom_call.1} parent=0 // loop_header
    %s13 = sphi 0, %s17
    %p14 = scmp.ge.s32.totalorder %s13, 4
    %s20 = sphi 0, %s39
    %s21 = sphi 0, %s35
    %s22 = sphi 0, %s31
    %s23 = sphi 0, %s20
    %s24 = sphi 0, %s21
    %s25 = sphi 0, %s22
    %s26 = sphi 0, %s23
    %s27 = sphi 0, %s24
    %s28 = sphi 0, %s25
    %s44 = sphi 0, %s46
    %s47 = sphi 0, %s44
    %s48 = sphi 0, %s47
    %s64 = sphi 0, %s48
    %s68 = sphi 0, %s68
    %s70 = sphi 0, %s68
    %s71 = sphi 0, %s70
    %s85 = sphi 0, %s71
    %s89 = sphi 0, %s89
    %s91 = sphi 0, %s89
    %s92 = sphi 0, %s91
    %s106 = sphi 0, %s92
    %s110 = sphi 0, %s110
    %s112 = sphi 0, %s110
    %s113 = sphi 0, %s112
    %s127 = sphi 0, %s113
    %s131 = sphi 0, %s131
    %s133 = sphi 0, %s131
    %s134 = sphi 0, %s133
    %s148 = sphi 0, %s134
    %s152 = sphi 0, %s152
    %s154 = sphi 0, %s152
    %s155 = sphi 0, %s154
    %s169 = sphi 0, %s155
    %s173 = sphi 0, %s173
    %s175 = sphi 0, %s173
    %s176 = sphi 0, %s175
    %s190 = sphi 0, %s176
    %s202 = sphi 0, %s204
    %s205 = sphi 0, %s202
    %s206 = sphi 0, %s205
    %s222 = sphi 0, %s206
  $region4: #{tpu_custom_call.1} parent=0 // loop_header_branch
    %16 = sbr.rel (%p14) target = $region8
  $region5: #{tpu_custom_call.1} parent=0 // loop_body
    %s18 = ssub.s32 %s13, 1
    %s19 = ssub.s32 %s13, 2
    %s29 = sadd.s32 1, %s22
    %p30 = scmp.ge.s32.totalorder %s29, 1
    %s31 = scalar_select %p30, 0, %s29
    %s32 = sadd.s32 1, %s21
    %s33 = scalar_select %p30, %s32, %s21
    %p34 = scmp.ge.s32.totalorder %s33, 1
    %s35 = scalar_select %p34, 0, %s33
    %s36 = sadd.s32 1, %s20
    %s37 = scalar_select %p34, %s36, %s20
    %p38 = scmp.ge.s32.totalorder %s37, 2
    %s39 = scalar_select %p38, 0, %s37
    %s40 = ssub.s32 %s21, %s35
    %s41 = ssub.s32 %s22, %s31
    %s42 = sor.u32 %s40, %s41
    %p43 = scmp.eq.s32.totalorder %s42, 0
    %s45 = sadd.s32 %s44, 1
    %s46 = scalar_select %p43, %s44, %s45
    %p49 = pneg %p43
    %p50 = scmp.eq.s32.totalorder %s13, 1
    %p51 = por %p49, %p50
    %p52 = scmp.ne.s32.totalorder %s44, %s47
    %p53 = scmp.eq.s32.totalorder %s13, 0
    %p54 = por %p52, %p53
    %p55 = scmp.ne.s32.totalorder %s44, %s47
    %p56 = scmp.eq.s32.totalorder %s18, 1
    %p57 = por %p55, %p56
    %p58 = scmp.ne.s32.totalorder %s47, %s48
    %p59 = scmp.eq.s32.totalorder %s18, 0
    %p60 = por %p58, %p59
    %p61 = scmp.ne.s32.totalorder %s47, %s48
    %p62 = scmp.eq.s32.totalorder %s19, 1
    %p63 = por %p61, %p62
    %p65 = scmp.ne.s32.totalorder %s48, %s64
    %p66 = scmp.eq.s32.totalorder %s19, 0
    %p67 = por %p65, %p66
    %s69 = sadd.s32 %s68, 1
    %p72 = scmp.eq.s32.totalorder %s13, 1
    %p73 = scmp.ne.s32.totalorder %s68, %s70
    %p74 = scmp.eq.s32.totalorder %s13, 0
    %p75 = por %p73, %p74
    %p76 = scmp.ne.s32.totalorder %s68, %s70
    %p77 = scmp.eq.s32.totalorder %s18, 1
    %p78 = por %p76, %p77
    %p79 = scmp.ne.s32.totalorder %s70, %s71
    %p80 = scmp.eq.s32.totalorder %s18, 0
    %p81 = por %p79, %p80
    %p82 = scmp.ne.s32.totalorder %s70, %s71
    %p83 = scmp.eq.s32.totalorder %s19, 1
    %p84 = por %p82, %p83
    %p86 = scmp.ne.s32.totalorder %s71, %s85
    %p87 = scmp.eq.s32.totalorder %s19, 0
    %p88 = por %p86, %p87
    %s90 = sadd.s32 %s89, 1
    %p93 = scmp.eq.s32.totalorder %s13, 1
    %p94 = scmp.ne.s32.totalorder %s89, %s91
    %p95 = scmp.eq.s32.totalorder %s13, 0
    %p96 = por %p94, %p95
    %p97 = scmp.ne.s32.totalorder %s89, %s91
    %p98 = scmp.eq.s32.totalorder %s18, 1
    %p99 = por %p97, %p98
    %p100 = scmp.ne.s32.totalorder %s91, %s92
    %p101 = scmp.eq.s32.totalorder %s18, 0
    %p102 = por %p100, %p101
    %p103 = scmp.ne.s32.totalorder %s91, %s92
    %p104 = scmp.eq.s32.totalorder %s19, 1
    %p105 = por %p103, %p104
    %p107 = scmp.ne.s32.totalorder %s92, %s106
    %p108 = scmp.eq.s32.totalorder %s19, 0
    %p109 = por %p107, %p108
    %s111 = sadd.s32 %s110, 1
    %p114 = scmp.eq.s32.totalorder %s13, 1
    %p115 = scmp.ne.s32.totalorder %s110, %s112
    %p116 = scmp.eq.s32.totalorder %s13, 0
    %p117 = por %p115, %p116
    %p118 = scmp.ne.s32.totalorder %s110, %s112
    %p119 = scmp.eq.s32.totalorder %s18, 1
    %p120 = por %p118, %p119
    %p121 = scmp.ne.s32.totalorder %s112, %s113
    %p122 = scmp.eq.s32.totalorder %s18, 0
    %p123 = por %p121, %p122
    %p124 = scmp.ne.s32.totalorder %s112, %s113
    %p125 = scmp.eq.s32.totalorder %s19, 1
    %p126 = por %p124, %p125
    %p128 = scmp.ne.s32.totalorder %s113, %s127
    %p129 = scmp.eq.s32.totalorder %s19, 0
    %p130 = por %p128, %p129
    %s132 = sadd.s32 %s131, 1
    %p135 = scmp.eq.s32.totalorder %s13, 1
    %p136 = scmp.ne.s32.totalorder %s131, %s133
    %p137 = scmp.eq.s32.totalorder %s13, 0
    %p138 = por %p136, %p137
    %p139 = scmp.ne.s32.totalorder %s131, %s133
    %p140 = scmp.eq.s32.totalorder %s18, 1
    %p141 = por %p139, %p140
    %p142 = scmp.ne.s32.totalorder %s133, %s134
    %p143 = scmp.eq.s32.totalorder %s18, 0
    %p144 = por %p142, %p143
    %p145 = scmp.ne.s32.totalorder %s133, %s134
    %p146 = scmp.eq.s32.totalorder %s19, 1
    %p147 = por %p145, %p146
    %p149 = scmp.ne.s32.totalorder %s134, %s148
    %p150 = scmp.eq.s32.totalorder %s19, 0
    %p151 = por %p149, %p150
    %s153 = sadd.s32 %s152, 1
    %p156 = scmp.eq.s32.totalorder %s13, 1
    %p157 = scmp.ne.s32.totalorder %s152, %s154
    %p158 = scmp.eq.s32.totalorder %s13, 0
    %p159 = por %p157, %p158
    %p160 = scmp.ne.s32.totalorder %s152, %s154
    %p161 = scmp.eq.s32.totalorder %s18, 1
    %p162 = por %p160, %p161
    %p163 = scmp.ne.s32.totalorder %s154, %s155
    %p164 = scmp.eq.s32.totalorder %s18, 0
    %p165 = por %p163, %p164
    %p166 = scmp.ne.s32.totalorder %s154, %s155
    %p167 = scmp.eq.s32.totalorder %s19, 1
    %p168 = por %p166, %p167
    %p170 = scmp.ne.s32.totalorder %s155, %s169
    %p171 = scmp.eq.s32.totalorder %s19, 0
    %p172 = por %p170, %p171
    %s174 = sadd.s32 %s173, 1
    %p177 = scmp.eq.s32.totalorder %s13, 1
    %p178 = scmp.ne.s32.totalorder %s173, %s175
    %p179 = scmp.eq.s32.totalorder %s13, 0
    %p180 = por %p178, %p179
    %p181 = scmp.ne.s32.totalorder %s173, %s175
    %p182 = scmp.eq.s32.totalorder %s18, 1
    %p183 = por %p181, %p182
    %p184 = scmp.ne.s32.totalorder %s175, %s176
    %p185 = scmp.eq.s32.totalorder %s18, 0
    %p186 = por %p184, %p185
    %p187 = scmp.ne.s32.totalorder %s175, %s176
    %p188 = scmp.eq.s32.totalorder %s19, 1
    %p189 = por %p187, %p188
    %p191 = scmp.ne.s32.totalorder %s176, %s190
    %p192 = scmp.eq.s32.totalorder %s19, 0
    %p193 = por %p191, %p192
    %s194 = smul.u32 %s20, %s21
    %s195 = smul.u32 %s20, %s22
    %s196 = smul.u32 %s39, %s35
    %s197 = smul.u32 %s39, %s31
    %s198 = ssub.s32 %s194, %s196
    %s199 = ssub.s32 %s195, %s197
    %s200 = sor.u32 %s198, %s199
    %p201 = scmp.eq.s32.totalorder %s200, 0
    %s203 = sadd.s32 %s202, 1
    %s204 = scalar_select %p201, %s202, %s203
    %p207 = pneg %p201
    %p208 = scmp.eq.s32.totalorder %s13, 1
    %p209 = por %p207, %p208
    %p210 = scmp.ne.s32.totalorder %s202, %s205
    %p211 = scmp.eq.s32.totalorder %s13, 0
    %p212 = por %p210, %p211
    %p213 = scmp.ne.s32.totalorder %s202, %s205
    %p214 = scmp.eq.s32.totalorder %s18, 1
    %p215 = por %p213, %p214
    %p216 = scmp.ne.s32.totalorder %s205, %s206
    %p217 = scmp.eq.s32.totalorder %s18, 0
    %p218 = por %p216, %p217
    %p219 = scmp.ne.s32.totalorder %s205, %s206
    %p220 = scmp.eq.s32.totalorder %s19, 1
    %p221 = por %p219, %p220
    %p223 = scmp.ne.s32.totalorder %s206, %s222
    %p224 = scmp.eq.s32.totalorder %s19, 0
    %p225 = por %p223, %p224
    %p226 = scmp.le.s32.totalorder 1, %s13
    %p227 = scmp.lt.s32.totalorder %s13, 3
    %p228 = pnand %p226, %p227
    %p229 = pneg %p228
    // Predicated region
    $region9: #{tpu_custom_call.1} parent=5 // pred_check
      _
    $region10: #{tpu_custom_call.1} parent=5 // pred_check_branch
      %231 = sbr.rel (%p228) target = $region12
    $region11: #{tpu_custom_call.1} parent=5 // pred_region
      %s232 = ssub.s32 %s13, 1
      // Predicated region
      $region13: #{tpu_custom_call.1} parent=11 // pred_check
        %p233 = pneg %p60
      $region14: #{tpu_custom_call.1} parent=11 // pred_check_branch
        %235 = sbr.rel (%p233) target = $region16
      $region15: #{tpu_custom_call.1} parent=11 // pred_region
        %s236 = smul.u32 2, %s24
        %p237 = scmp.lt.s32.totalorder %s236, 1
        %s238 = scalar_select %p237, %s236, 1
        %p239 = scmp.lt.s32.totalorder %s25, 0
        %s240 = scalar_select %p239, %s25, 0
        %s241 = sadd.s32 %s240, %s238
        %s242 = smul.addr %s241, 4
        %s243 = scalar_lea.vmem %s0, %s242
        %s244 = smul.u32 2, %s24
      $region16: #{tpu_custom_call.1} parent=11 // pred_fallthru
        _
      // Predicated region
      $region17: #{tpu_custom_call.1} parent=11 // pred_check
        %p245 = pneg %p81
      $region18: #{tpu_custom_call.1} parent=11 // pred_check_branch
        %247 = sbr.rel (%p245) target = $region20
      $region19: #{tpu_custom_call.1} parent=11 // pred_region
        _
      $region20: #{tpu_custom_call.1} parent=11 // pred_fallthru
        _
      // Predicated region
      $region21: #{tpu_custom_call.1} parent=11 // pred_check
        %p248 = pneg %p102
      $region22: #{tpu_custom_call.1} parent=11 // pred_check_branch
        %250 = sbr.rel (%p248) target = $region24
      $region23: #{tpu_custom_call.1} parent=11 // pred_region
        _
      $region24: #{tpu_custom_call.1} parent=11 // pred_fallthru
        _
      // Predicated region
      $region25: #{tpu_custom_call.1} parent=11 // pred_check
        %p251 = pneg %p123
      $region26: #{tpu_custom_call.1} parent=11 // pred_check_branch
        %253 = sbr.rel (%p251) target = $region28
      $region27: #{tpu_custom_call.1} parent=11 // pred_region
        _
      $region28: #{tpu_custom_call.1} parent=11 // pred_fallthru
        _
      // Predicated region
      $region29: #{tpu_custom_call.1} parent=11 // pred_check
        %p254 = pneg %p144
      $region30: #{tpu_custom_call.1} parent=11 // pred_check_branch
        %256 = sbr.rel (%p254) target = $region32
      $region31: #{tpu_custom_call.1} parent=11 // pred_region
        _
      $region32: #{tpu_custom_call.1} parent=11 // pred_fallthru
        _
      // Predicated region
      $region33: #{tpu_custom_call.1} parent=11 // pred_check
        %p257 = pneg %p165
      $region34: #{tpu_custom_call.1} parent=11 // pred_check_branch
        %259 = sbr.rel (%p257) target = $region36
      $region35: #{tpu_custom_call.1} parent=11 // pred_region
        _
      $region36: #{tpu_custom_call.1} parent=11 // pred_fallthru
        _
      // Predicated region
      $region37: #{tpu_custom_call.1} parent=11 // pred_check
        %p260 = pneg %p186
      $region38: #{tpu_custom_call.1} parent=11 // pred_check_branch
        %262 = sbr.rel (%p260) target = $region40
      $region39: #{tpu_custom_call.1} parent=11 // pred_region
        _
      $region40: #{tpu_custom_call.1} parent=11 // pred_fallthru
        _
    $region12: #{tpu_custom_call.1} parent=5 // pred_fallthru
      _
    %p263 = scmp.lt.s32.totalorder %s13, 2
    // Predicated region
    $region41: #{tpu_custom_call.1} parent=5 // pred_check
      %p264 = pneg %p263
    $region42: #{tpu_custom_call.1} parent=5 // pred_check_branch
      %266 = sbr.rel (%p264) target = $region44
    $region43: #{tpu_custom_call.1} parent=5 // pred_region
      _
    $region44: #{tpu_custom_call.1} parent=5 // pred_fallthru
      _
    %p267 = scmp.le.s32.totalorder 1, %s13
    %p268 = scmp.lt.s32.totalorder %s13, 3
    %p269 = pnand %p267, %p268
    %p270 = pneg %p269
    // Predicated region
    $region45: #{tpu_custom_call.1} parent=5 // pred_check
      _
    $region46: #{tpu_custom_call.1} parent=5 // pred_check_branch
      %272 = sbr.rel (%p269) target = $region48
    $region47: #{tpu_custom_call.1} parent=5 // pred_region
      %s273 = ssub.s32 %s13, 1
      %s274 = smul.u32 2, %s24
      %p275 = scmp.lt.s32.totalorder %s274, 1
      %s276 = scalar_select %p275, %s274, 1
      %p277 = scmp.lt.s32.totalorder %s25, 0
      %s278 = scalar_select %p277, %s25, 0
      %s279 = sadd.s32 %s278, %s276
      %s280 = smul.addr %s279, 4
      %s281 = scalar_lea.vmem %s0, %s280
      %p282 = pneg %p60
      %p283 = pneg %p57
      %p284 = pneg %p81
      %p285 = pneg %p78
      %p286 = pneg %p102
      %p287 = pneg %p99
      %p288 = pneg %p123
      %p289 = pneg %p120
      %p290 = pneg %p144
      %p291 = pneg %p141
      %p292 = pneg %p165
      %p293 = pneg %p162
      %p294 = pneg %p186
      %p295 = pneg %p183
      %p296 = pneg %p218
      %p297 = pneg %p215
      %s298 = smul.u32 %s23, %s24
      %s299 = smul.u32 %s23, %s25
      %s300 = smul.u32 2, %s298
      %p301 = scmp.lt.s32.totalorder %s300, 1
      %s302 = scalar_select %p301, %s300, 1
      %p303 = scmp.lt.s32.totalorder %s299, 0
      %s304 = scalar_select %p303, %s299, 0
      %s305 = sadd.s32 %s304, %s302
      %s306 = smul.addr %s305, 8
      %s307 = scalar_lea.vmem %s7, %s306
      %s308 = smul.u32 2, %s24
      %p309 = scmp.lt.s32.totalorder %s308, 1
      %s310 = scalar_select %p309, %s308, 1
      %p311 = scmp.lt.s32.totalorder %s25, 0
      %s312 = scalar_select %p311, %s25, 0
      %s313 = sadd.s32 %s312, %s310
      %s314 = smul.addr %s313, 4
      %s315 = scalar_lea.vmem %s0, %s314
      %s316 = smul.u32 2, %s24
      %s317 = smul.u32 %s23, %s24
      %s318 = smul.u32 %s23, %s25
      %s319 = smul.u32 2, %s317
      %p320 = scmp.lt.s32.totalorder %s319, 1
      %s321 = scalar_select %p320, %s319, 1
      %p322 = scmp.lt.s32.totalorder %s318, 0
      %s323 = scalar_select %p322, %s318, 0
      %s324 = sadd.s32 %s323, %s321
      %s325 = smul.addr %s324, 8
      %s326 = scalar_lea.vmem %s7, %s325
      %s327 = smul.u32 %s23, %s24
      %s328 = smul.u32 %s23, %s25
      %s329 = smul.u32 2, %s327
      %p330 = scmp.eq.s32.totalorder %s24, 0
      %p331 = scmp.eq.s32.totalorder %s25, 0
      %p332 = pnand %p330, %p331
      %p333 = pneg %p332
      %p334 = scmp.eq.s32.totalorder %s23, 0
      %p335 = pnand %p334, %p333
      %p336 = pneg %p335
      // Predicated region
      $region49: #{tpu_custom_call.1} parent=47 // pred_check
        _
      $region50: #{tpu_custom_call.1} parent=47 // pred_check_branch
        %338 = sbr.rel (%p335) target = $region52
      $region51: #{tpu_custom_call.1} parent=47 // pred_region
        %v339 = vld [vmem:[%s1] sm:$0xff]
        %v340 = vld [vmem:[%s1 + $0x8] sm:$0xff]
        %v341 = vld [vmem:[%s1 + $0x10] sm:$0xff]
        %v342 = vld [vmem:[%s1 + $0x18] sm:$0xff]
        %vm343 = vcmask 31744
        %344 = vst.msk [vmem:[#allocation2] sm:$0xff] %vm343, %v339
        %345 = vst.msk [vmem:[#allocation2 + $0x8] sm:$0xff] %vm343, %v340
        %346 = vst.msk [vmem:[#allocation2 + $0x10] sm:$0xff] %vm343, %v341
        %347 = vst.msk [vmem:[#allocation2 + $0x18] sm:$0xff] %vm343, %v342
        %v348 = vld [vmem:[%s2] sm:$0xff]
        %v349 = vld [vmem:[%s2 + $0x8] sm:$0xff]
        %v350 = vld [vmem:[%s2 + $0x10] sm:$0xff]
        %v351 = vld [vmem:[%s2 + $0x18] sm:$0xff]
        %vm352 = vcmask 7168
        %353 = vst.msk [vmem:[#allocation3] sm:$0xff] %vm352, %v348
        %354 = vst.msk [vmem:[#allocation3 + $0x8] sm:$0xff] %vm352, %v349
        %355 = vst.msk [vmem:[#allocation3 + $0x10] sm:$0xff] %vm352, %v350
        %356 = vst.msk [vmem:[#allocation3 + $0x18] sm:$0xff] %vm352, %v351
        %357 = vst.msk [vmem:[#allocation4] sm:$0xff] %vm352, 0.0
        %358 = vst.msk [vmem:[#allocation4 + $0x8] sm:$0xff] %vm352, 0.0
        %359 = vst.msk [vmem:[#allocation4 + $0x10] sm:$0xff] %vm352, 0.0
        %360 = vst.msk [vmem:[#allocation4 + $0x18] sm:$0xff] %vm352, 0.0
        %361 = vst.msk [vmem:[#allocation5] sm:$0xff] %vm352, 0.0
        %362 = vst.msk [vmem:[#allocation5 + $0x8] sm:$0xff] %vm352, 0.0
        %363 = vst.msk [vmem:[#allocation5 + $0x10] sm:$0xff] %vm352, 0.0
        %364 = vst.msk [vmem:[#allocation5 + $0x18] sm:$0xff] %vm352, 0.0
      $region52: #{tpu_custom_call.1} parent=47 // pred_fallthru
        _
      %p365 = scmp.eq.s32.totalorder %s23, 1
      %p366 = pnand %p365, %p333
      %p367 = pneg %p366
      // Predicated region
      $region53: #{tpu_custom_call.1} parent=47 // pred_check
        _
      $region54: #{tpu_custom_call.1} parent=47 // pred_check_branch
        %369 = sbr.rel (%p366) target = $region56
      $region55: #{tpu_custom_call.1} parent=47 // pred_region
        %v370 = vld [vmem:[#allocation4] sm:$0xff]
        %v371 = vld [vmem:[#allocation4 + $0x8] sm:$0xff]
        %v372 = vld [vmem:[#allocation4 + $0x10] sm:$0xff]
        %v373 = vld [vmem:[#allocation4 + $0x18] sm:$0xff]
        %v374 = vmul.f32 %v370, 0.03125
        %v375 = vmul.f32 %v371, 0.03125
        %v376 = vmul.f32 %v372, 0.03125
        %v377 = vmul.f32 %v373, 0.03125
        %v378 = vld [vmem:[#allocation5] sm:$0xff]
        %v379 = vld [vmem:[#allocation5 + $0x8] sm:$0xff]
        %v380 = vld [vmem:[#allocation5 + $0x10] sm:$0xff]
        %v381 = vld [vmem:[#allocation5 + $0x18] sm:$0xff]
        %v382 = vmul.f32 %v378, 0.03125
        %v383 = vmul.f32 %v379, 0.03125
        %v384 = vmul.f32 %v380, 0.03125
        %v385 = vmul.f32 %v381, 0.03125
        %v386 = vmul.f32 %v374, %v374
        %v387 = vmul.f32 %v375, %v375
        %v388 = vmul.f32 %v376, %v376
        %v389 = vmul.f32 %v377, %v377
        %v390 = vsub.f32 %v382, %v386
        %v391 = vsub.f32 %v383, %v387
        %v392 = vsub.f32 %v384, %v388
        %v393 = vsub.f32 %v385, %v389
        %v394 = vmax.f32 %v390, 0.0
        %v395 = vmax.f32 %v391, 0.0
        %v396 = vmax.f32 %v392, 0.0
        %v397 = vmax.f32 %v393, 0.0
        %v398 = vld [vmem:[%s3] sm:$0xff]
        %v399 = vld [vmem:[%s3 + $0x8] sm:$0xff]
        %v400 = vld [vmem:[%s3 + $0x10] sm:$0xff]
        %v401 = vld [vmem:[%s3 + $0x18] sm:$0xff]
        %v402 = vadd.f32 %v394, 1e-05
        %v403 = vadd.f32 %v395, 1e-05
        %v404 = vadd.f32 %v396, 1e-05
        %v405 = vadd.f32 %v397, 1e-05
        %v406 = vrsqrt.pop %v402
        %v407 = vmul.f32 %v406, %v402
        %v408 = vmul.f32 %v407, %v406
        %v409 = vmul.f32 0.5, %v408
        %v410 = vsub.f32 1.5, %v409
        %v411 = vmul.f32 %v406, %v410
        %vm412 = vweird.f32 %v402
        %vm413 = vweird.f32 %v406
        %vm414 = vmor %vm412, %vm413
        %v415 = vsel %vm414, %v406, %v411
        %v416 = vrsqrt.pop %v403
        %v417 = vmul.f32 %v416, %v403
        %v418 = vmul.f32 %v417, %v416
        %v419 = vmul.f32 0.5, %v418
        %v420 = vsub.f32 1.5, %v419
        %v421 = vmul.f32 %v416, %v420
        %vm422 = vweird.f32 %v403
        %vm423 = vweird.f32 %v416
        %vm424 = vmor %vm422, %vm423
        %v425 = vsel %vm424, %v416, %v421
        %v426 = vrsqrt.pop %v404
        %v427 = vmul.f32 %v426, %v404
        %v428 = vmul.f32 %v427, %v426
        %v429 = vmul.f32 0.5, %v428
        %v430 = vsub.f32 1.5, %v429
        %v431 = vmul.f32 %v426, %v430
        %vm432 = vweird.f32 %v404
        %vm433 = vweird.f32 %v426
        %vm434 = vmor %vm432, %vm433
        %v435 = vsel %vm434, %v426, %v431
        %v436 = vrsqrt.pop %v405
        %v437 = vmul.f32 %v436, %v405
        %v438 = vmul.f32 %v437, %v436
        %v439 = vmul.f32 0.5, %v438
        %v440 = vsub.f32 1.5, %v439
        %v441 = vmul.f32 %v436, %v440
        %vm442 = vweird.f32 %v405
        %vm443 = vweird.f32 %v436
        %vm444 = vmor %vm442, %vm443
        %v445 = vsel %vm444, %v436, %v441
        %v446 = vmul.f32 %v398, %v415
        %v447 = vmul.f32 %v399, %v425
        %v448 = vmul.f32 %v400, %v435
        %v449 = vmul.f32 %v401, %v445
        %v450 = vld [vmem:[%s1] sm:$0xff]
        %v451 = vld [vmem:[%s1 + $0x8] sm:$0xff]
        %v452 = vld [vmem:[%s1 + $0x10] sm:$0xff]
        %v453 = vld [vmem:[%s1 + $0x18] sm:$0xff]
        %455 = vset.pattern.permute.xlu0 0
        %456 = vperm.xlu0 %455, %v446
        %v457 = vpop.permute.xlu0 %456
        %460 = vset.pattern.permute.xlu0 0
        %461 = vperm.xlu0 %460, %v447
        %v462 = vpop.permute.xlu0 %461
        %465 = vset.pattern.permute.xlu0 0
        %466 = vperm.xlu0 %465, %v448
        %v467 = vpop.permute.xlu0 %466
        %470 = vset.pattern.permute.xlu0 0
        %471 = vperm.xlu0 %470, %v449
        %v472 = vpop.permute.xlu0 %471
        %v474 = vmul.f32 %v450, %v457
        %v475 = vmul.f32 %v451, %v462
        %v476 = vmul.f32 %v452, %v467
        %v477 = vmul.f32 %v453, %v472
        %vm478 = vcmask 31744
        %479 = vst.msk [vmem:[#allocation2] sm:$0xff] %vm478, %v474
        %480 = vst.msk [vmem:[#allocation2 + $0x8] sm:$0xff] %vm478, %v475
        %481 = vst.msk [vmem:[#allocation2 + $0x10] sm:$0xff] %vm478, %v476
        %482 = vst.msk [vmem:[#allocation2 + $0x18] sm:$0xff] %vm478, %v477
        %v483 = vld [vmem:[%s2] sm:$0xff]
        %v484 = vld [vmem:[%s2 + $0x8] sm:$0xff]
        %v485 = vld [vmem:[%s2 + $0x10] sm:$0xff]
        %v486 = vld [vmem:[%s2 + $0x18] sm:$0xff]
        %v487 = vsub.f32 %v483, %v374
        %v488 = vsub.f32 %v484, %v375
        %v489 = vsub.f32 %v485, %v376
        %v490 = vsub.f32 %v486, %v377
        %v491 = vmul.f32 %v487, %v446
        %v492 = vmul.f32 %v488, %v447
        %v493 = vmul.f32 %v489, %v448
        %v494 = vmul.f32 %v490, %v449
        %v495 = vld [vmem:[%s4] sm:$0xff]
        %v496 = vld [vmem:[%s4 + $0x8] sm:$0xff]
        %v497 = vld [vmem:[%s4 + $0x10] sm:$0xff]
        %v498 = vld [vmem:[%s4 + $0x18] sm:$0xff]
        %v499 = vadd.f32 %v491, %v495
        %v500 = vadd.f32 %v492, %v496
        %v501 = vadd.f32 %v493, %v497
        %v502 = vadd.f32 %v494, %v498
        %vm503 = vcmask 7168
        %504 = vst.msk [vmem:[#allocation3] sm:$0xff] %vm503, %v499
        %505 = vst.msk [vmem:[#allocation3 + $0x8] sm:$0xff] %vm503, %v500
        %506 = vst.msk [vmem:[#allocation3 + $0x10] sm:$0xff] %vm503, %v501
        %507 = vst.msk [vmem:[#allocation3 + $0x18] sm:$0xff] %vm503, %v502
      $region56: #{tpu_custom_call.1} parent=47 // pred_fallthru
        _
      %v508 = vld [vmem:[#allocation2] sm:$0xff]
      %v509 = vld [vmem:[#allocation2 + $0x8] sm:$0xff]
      %v510 = vld [vmem:[#allocation2 + $0x10] sm:$0xff]
      %v511 = vld [vmem:[#allocation2 + $0x18] sm:$0xff]
      %v512 = vld [vmem:[#allocation3] sm:$0xff]
      %v513 = vld [vmem:[#allocation3 + $0x8] sm:$0xff]
      %v514 = vld [vmem:[#allocation3 + $0x10] sm:$0xff]
      %v515 = vld [vmem:[#allocation3 + $0x18] sm:$0xff]
      // Predicated region
      $region57: #{tpu_custom_call.1} parent=47 // pred_check
        %p516 = pneg %p334
      $region58: #{tpu_custom_call.1} parent=47 // pred_check_branch
        %518 = sbr.rel (%p516) target = $region60
      $region59: #{tpu_custom_call.1} parent=47 // pred_region
        %v519 = vld [vmem:[#allocation4] sm:$0xff]
        %v520 = vld [vmem:[#allocation4 + $0x8] sm:$0xff]
        %v521 = vld [vmem:[#allocation4 + $0x10] sm:$0xff]
        %v522 = vld [vmem:[#allocation4 + $0x18] sm:$0xff]
        %v523 = vld [vmem:[#allocation5] sm:$0xff]
        %v524 = vld [vmem:[#allocation5 + $0x8] sm:$0xff]
        %v525 = vld [vmem:[#allocation5 + $0x10] sm:$0xff]
        %v526 = vld [vmem:[#allocation5 + $0x18] sm:$0xff]
        %v527 = vld [vmem:[%s315] sm:$0xf]
        %529 = vset.pattern.permute.xlu0 0
        %530 = vperm.xlu0 %529, %v512
        %v531 = vpop.permute.xlu0 %530
        %534 = vset.pattern.permute.xlu0 0
        %535 = vperm.xlu0 %534, %v513
        %v536 = vpop.permute.xlu0 %535
        %539 = vset.pattern.permute.xlu0 0
        %540 = vperm.xlu0 %539, %v514
        %v541 = vpop.permute.xlu0 %540
        %544 = vset.pattern.permute.xlu0 0
        %545 = vperm.xlu0 %544, %v515
        %v546 = vpop.permute.xlu0 %545
        %vm548 = vcmask 31744
        %v550 = vsel %vm548, %v508, 0
        %v553 = vsel %vm548, %v509, 0
        %v556 = vsel %vm548, %v510, 0
        %v559 = vsel %vm548, %v511, 0
        %vm561 = vcmask 1043456
        %v563 = vsel %vm561, %v527, 0
        %565 = vmatpush.msra.mxu0 0.0
        %566 = vmatpush.msra.mxu0 0.0
        %567 = vmatpush.msra.mxu0 0.0
        %568 = vmatpush.msra.mxu0 0.0
        %569 = vmatpush.msra.mxu0 0.0
        %570 = vmatpush.msra.mxu0 0.0
        %571 = vmatpush.msra.mxu0 0.0
        %572 = vmatpush.msra.mxu0 0.0
        %573 = vmatpush.msra.mxu0 0.0
        %574 = vmatpush.msra.mxu0 0.0
        %575 = vmatpush.msra.mxu0 0.0
        %576 = vmatpush.msra.mxu0 0.0
        %577 = vmatpush.msra.mxu0 0.0
        %578 = vmatpush.msra.mxu0 0.0
        %579 = vmatpush.msra.mxu0 0.0
        %580 = vmatpush.msra.mxu0 %v563
        %581 = vmatmul.f32.gmra.mxu0 %v550
        %v582 = vpop.f32.mrf.mxu0
        %v583 = vadd.f32 %v531, %v582
        %584 = vmatmul.f32.gmra.mxu0 %v553
        %v585 = vpop.f32.mrf.mxu0
        %v586 = vadd.f32 %v536, %v585
        %587 = vmatmul.f32.gmra.mxu0 %v556
        %v588 = vpop.f32.mrf.mxu0
        %v589 = vadd.f32 %v541, %v588
        %590 = vmatmul.f32.gmra.mxu0 %v559
        %v591 = vpop.f32.mrf.mxu0
        %v592 = vadd.f32 %v546, %v591
        %593 = vdwg.mxu0
        %vm594 = vcmask 130048
        %v595 = vsel %vm594, %v583, 0.0
        %596 = vadd.xlane.f32.xlu0 %v595
        %v597 = vpop.xlane.xlu0 %596
        %v598 = vsel %vm594, %v586, 0.0
        %599 = vadd.xlane.f32.xlu0 %v598
        %v600 = vpop.xlane.xlu0 %599
        %v601 = vsel %vm594, %v589, 0.0
        %602 = vadd.xlane.f32.xlu0 %v601
        %v603 = vpop.xlane.xlu0 %602
        %v604 = vsel %vm594, %v592, 0.0
        %605 = vadd.xlane.f32.xlu0 %v604
        %v606 = vpop.xlane.xlu0 %605
        %v607 = vadd.f32 %v519, %v597
        %v608 = vadd.f32 %v520, %v600
        %v609 = vadd.f32 %v521, %v603
        %v610 = vadd.f32 %v522, %v606
        %v611 = vmul.f32 %v583, %v583
        %v612 = vmul.f32 %v586, %v586
        %v613 = vmul.f32 %v589, %v589
        %v614 = vmul.f32 %v592, %v592
        %v615 = vsel %vm594, %v611, 0.0
        %616 = vadd.xlane.f32.xlu0 %v615
        %v617 = vpop.xlane.xlu0 %616
        %v618 = vsel %vm594, %v612, 0.0
        %619 = vadd.xlane.f32.xlu0 %v618
        %v620 = vpop.xlane.xlu0 %619
        %v621 = vsel %vm594, %v613, 0.0
        %622 = vadd.xlane.f32.xlu0 %v621
        %v623 = vpop.xlane.xlu0 %622
        %v624 = vsel %vm594, %v614, 0.0
        %625 = vadd.xlane.f32.xlu0 %v624
        %v626 = vpop.xlane.xlu0 %625
        %v627 = vadd.f32 %v523, %v617
        %v628 = vadd.f32 %v524, %v620
        %v629 = vadd.f32 %v525, %v623
        %v630 = vadd.f32 %v526, %v626
        %s631 = scalar_lea.vmem %s315, 4
        %v632 = vld [vmem:[%s631] sm:$0xf]
        %v634 = vsel %vm561, %v632, 0
        %636 = vmatpush.msra.mxu0 0.0
        %637 = vmatpush.msra.mxu0 0.0
        %638 = vmatpush.msra.mxu0 0.0
        %639 = vmatpush.msra.mxu0 0.0
        %640 = vmatpush.msra.mxu0 0.0
        %641 = vmatpush.msra.mxu0 0.0
        %642 = vmatpush.msra.mxu0 0.0
        %643 = vmatpush.msra.mxu0 0.0
        %644 = vmatpush.msra.mxu0 0.0
        %645 = vmatpush.msra.mxu0 0.0
        %646 = vmatpush.msra.mxu0 0.0
        %647 = vmatpush.msra.mxu0 0.0
        %648 = vmatpush.msra.mxu0 0.0
        %649 = vmatpush.msra.mxu0 0.0
        %650 = vmatpush.msra.mxu0 0.0
        %651 = vmatpush.msra.mxu0 %v634
        %652 = vmatmul.f32.gmra.mxu0 %v550
        %v653 = vpop.f32.mrf.mxu0
        %v654 = vadd.f32 %v531, %v653
        %655 = vmatmul.f32.gmra.mxu0 %v553
        %v656 = vpop.f32.mrf.mxu0
        %v657 = vadd.f32 %v536, %v656
        %658 = vmatmul.f32.gmra.mxu0 %v556
        %v659 = vpop.f32.mrf.mxu0
        %v660 = vadd.f32 %v541, %v659
        %661 = vmatmul.f32.gmra.mxu0 %v559
        %v662 = vpop.f32.mrf.mxu0
        %v663 = vadd.f32 %v546, %v662
        %664 = vdwg.mxu0
        %v665 = vsel %vm594, %v654, 0.0
        %666 = vadd.xlane.f32.xlu0 %v665
        %v667 = vpop.xlane.xlu0 %666
        %v668 = vsel %vm594, %v657, 0.0
        %669 = vadd.xlane.f32.xlu0 %v668
        %v670 = vpop.xlane.xlu0 %669
        %v671 = vsel %vm594, %v660, 0.0
        %672 = vadd.xlane.f32.xlu0 %v671
        %v673 = vpop.xlane.xlu0 %672
        %v674 = vsel %vm594, %v663, 0.0
        %675 = vadd.xlane.f32.xlu0 %v674
        %v676 = vpop.xlane.xlu0 %675
        %v677 = vadd.f32 %v607, %v667
        %v678 = vadd.f32 %v608, %v670
        %v679 = vadd.f32 %v609, %v673
        %v680 = vadd.f32 %v610, %v676
        %v681 = vmul.f32 %v654, %v654
        %v682 = vmul.f32 %v657, %v657
        %v683 = vmul.f32 %v660, %v660
        %v684 = vmul.f32 %v663, %v663
        %v685 = vsel %vm594, %v681, 0.0
        %686 = vadd.xlane.f32.xlu0 %v685
        %v687 = vpop.xlane.xlu0 %686
        %v688 = vsel %vm594, %v682, 0.0
        %689 = vadd.xlane.f32.xlu0 %v688
        %v690 = vpop.xlane.xlu0 %689
        %v691 = vsel %vm594, %v683, 0.0
        %692 = vadd.xlane.f32.xlu0 %v691
        %v693 = vpop.xlane.xlu0 %692
        %v694 = vsel %vm594, %v684, 0.0
        %695 = vadd.xlane.f32.xlu0 %v694
        %v696 = vpop.xlane.xlu0 %695
        %v697 = vadd.f32 %v627, %v687
        %v698 = vadd.f32 %v628, %v690
        %v699 = vadd.f32 %v629, %v693
        %v700 = vadd.f32 %v630, %v696
        %vm701 = vcmask 7168
        %702 = vst.msk [vmem:[#allocation4] sm:$0xff] %vm701, %v677
        %703 = vst.msk [vmem:[#allocation4 + $0x8] sm:$0xff] %vm701, %v678
        %704 = vst.msk [vmem:[#allocation4 + $0x10] sm:$0xff] %vm701, %v679
        %705 = vst.msk [vmem:[#allocation4 + $0x18] sm:$0xff] %vm701, %v680
        %706 = vst.msk [vmem:[#allocation5] sm:$0xff] %vm701, %v697
        %707 = vst.msk [vmem:[#allocation5 + $0x8] sm:$0xff] %vm701, %v698
        %708 = vst.msk [vmem:[#allocation5 + $0x10] sm:$0xff] %vm701, %v699
        %709 = vst.msk [vmem:[#allocation5 + $0x18] sm:$0xff] %vm701, %v700
      $region60: #{tpu_custom_call.1} parent=47 // pred_fallthru
        _
      // Predicated region
      $region61: #{tpu_custom_call.1} parent=47 // pred_check
        %p710 = pneg %p365
      $region62: #{tpu_custom_call.1} parent=47 // pred_check_branch
        %712 = sbr.rel (%p710) target = $region64
      $region63: #{tpu_custom_call.1} parent=47 // pred_region
        %v713 = vld [vmem:[%s5] sm:$0x3f]
        %v714 = vld [vmem:[%s6] sm:$0x3f]
        %v715 = vld [vmem:[%s315] sm:$0xf]
        %717 = vset.pattern.permute.xlu0 0
        %718 = vperm.xlu0 %717, %v512
        %v719 = vpop.permute.xlu0 %718
        %722 = vset.pattern.permute.xlu0 0
        %723 = vperm.xlu0 %722, %v513
        %v724 = vpop.permute.xlu0 %723
        %727 = vset.pattern.permute.xlu0 0
        %728 = vperm.xlu0 %727, %v514
        %v729 = vpop.permute.xlu0 %728
        %732 = vset.pattern.permute.xlu0 0
        %733 = vperm.xlu0 %732, %v515
        %v734 = vpop.permute.xlu0 %733
        %vm736 = vcmask 31744
        %v738 = vsel %vm736, %v508, 0
        %v741 = vsel %vm736, %v509, 0
        %v744 = vsel %vm736, %v510, 0
        %v747 = vsel %vm736, %v511, 0
        %vm749 = vcmask 1043456
        %v751 = vsel %vm749, %v715, 0
        %753 = vmatpush.msra.mxu0 0.0
        %754 = vmatpush.msra.mxu0 0.0
        %755 = vmatpush.msra.mxu0 0.0
        %756 = vmatpush.msra.mxu0 0.0
        %757 = vmatpush.msra.mxu0 0.0
        %758 = vmatpush.msra.mxu0 0.0
        %759 = vmatpush.msra.mxu0 0.0
        %760 = vmatpush.msra.mxu0 0.0
        %761 = vmatpush.msra.mxu0 0.0
        %762 = vmatpush.msra.mxu0 0.0
        %763 = vmatpush.msra.mxu0 0.0
        %764 = vmatpush.msra.mxu0 0.0
        %765 = vmatpush.msra.mxu0 0.0
        %766 = vmatpush.msra.mxu0 0.0
        %767 = vmatpush.msra.mxu0 0.0
        %768 = vmatpush.msra.mxu0 %v751
        %769 = vmatmul.f32.gmra.mxu0 %v738
        %v770 = vpop.f32.mrf.mxu0
        %v771 = vadd.f32 %v719, %v770
        %772 = vmatmul.f32.gmra.mxu0 %v741
        %v773 = vpop.f32.mrf.mxu0
        %v774 = vadd.f32 %v724, %v773
        %775 = vmatmul.f32.gmra.mxu0 %v744
        %v776 = vpop.f32.mrf.mxu0
        %v777 = vadd.f32 %v729, %v776
        %778 = vmatmul.f32.gmra.mxu0 %v747
        %v779 = vpop.f32.mrf.mxu0
        %v780 = vadd.f32 %v734, %v779
        %781 = vdwg.mxu0
        %v782 = vmax.f32 %v771, 0.0
        %v783 = vmax.f32 %v774, 0.0
        %v784 = vmax.f32 %v777, 0.0
        %v785 = vmax.f32 %v780, 0.0
        %787 = vset.pattern.permute.xlu0 0
        %788 = vperm.xlu0 %787, %v714
        %v789 = vpop.permute.xlu0 %788
        %vm791 = vcmask 261120
        %v793 = vsel %vm791, %v713, 0
        %795 = vmatpush.msra.mxu0 0.0
        %796 = vmatpush.msra.mxu0 0.0
        %797 = vmatpush.msra.mxu0 0.0
        %798 = vmatpush.msra.mxu0 0.0
        %799 = vmatpush.msra.mxu0 0.0
        %800 = vmatpush.msra.mxu0 0.0
        %801 = vmatpush.msra.mxu0 0.0
        %802 = vmatpush.msra.mxu0 0.0
        %803 = vmatpush.msra.mxu0 0.0
        %804 = vmatpush.msra.mxu0 0.0
        %805 = vmatpush.msra.mxu0 0.0
        %806 = vmatpush.msra.mxu0 0.0
        %807 = vmatpush.msra.mxu0 %v785
        %808 = vmatpush.msra.mxu0 %v784
        %809 = vmatpush.msra.mxu0 %v783
        %810 = vmatpush.msra.mxu0 %v782
        %811 = vmatmul.f32.gmra.mxu0 %v793
        %v812 = vpop.f32.mrf.mxu0
        %v813 = vadd.f32 %v789, %v812
        %814 = vdwg.mxu0
        %vm815 = vcmask 128000
        %816 = vst.msk [vmem:[%s326] sm:$0x3f] %vm815, %v813
        %s817 = scalar_lea.vmem %s315, 4
        %v818 = vld [vmem:[%s817] sm:$0xf]
        %v820 = vsel %vm749, %v818, 0
        %822 = vmatpush.msra.mxu0 0.0
        %823 = vmatpush.msra.mxu0 0.0
        %824 = vmatpush.msra.mxu0 0.0
        %825 = vmatpush.msra.mxu0 0.0
        %826 = vmatpush.msra.mxu0 0.0
        %827 = vmatpush.msra.mxu0 0.0
        %828 = vmatpush.msra.mxu0 0.0
        %829 = vmatpush.msra.mxu0 0.0
        %830 = vmatpush.msra.mxu0 0.0
        %831 = vmatpush.msra.mxu0 0.0
        %832 = vmatpush.msra.mxu0 0.0
        %833 = vmatpush.msra.mxu0 0.0
        %834 = vmatpush.msra.mxu0 0.0
        %835 = vmatpush.msra.mxu0 0.0
        %836 = vmatpush.msra.mxu0 0.0
        %837 = vmatpush.msra.mxu0 %v820
        %838 = vmatmul.f32.gmra.mxu0 %v738
        %v839 = vpop.f32.mrf.mxu0
        %v840 = vadd.f32 %v719, %v839
        %841 = vmatmul.f32.gmra.mxu0 %v741
        %v842 = vpop.f32.mrf.mxu0
        %v843 = vadd.f32 %v724, %v842
        %844 = vmatmul.f32.gmra.mxu0 %v744
        %v845 = vpop.f32.mrf.mxu0
        %v846 = vadd.f32 %v729, %v845
        %847 = vmatmul.f32.gmra.mxu0 %v747
        %v848 = vpop.f32.mrf.mxu0
        %v849 = vadd.f32 %v734, %v848
        %850 = vdwg.mxu0
        %v851 = vmax.f32 %v840, 0.0
        %v852 = vmax.f32 %v843, 0.0
        %v853 = vmax.f32 %v846, 0.0
        %v854 = vmax.f32 %v849, 0.0
        %855 = vmatpush.msra.mxu0 0.0
        %856 = vmatpush.msra.mxu0 0.0
        %857 = vmatpush.msra.mxu0 0.0
        %858 = vmatpush.msra.mxu0 0.0
        %859 = vmatpush.msra.mxu0 0.0
        %860 = vmatpush.msra.mxu0 0.0
        %861 = vmatpush.msra.mxu0 0.0
        %862 = vmatpush.msra.mxu0 0.0
        %863 = vmatpush.msra.mxu0 0.0
        %864 = vmatpush.msra.mxu0 0.0
        %865 = vmatpush.msra.mxu0 0.0
        %866 = vmatpush.msra.mxu0 0.0
        %867 = vmatpush.msra.mxu0 %v854
        %868 = vmatpush.msra.mxu0 %v853
        %869 = vmatpush.msra.mxu0 %v852
        %870 = vmatpush.msra.mxu0 %v851
        %871 = vmatmul.f32.gmra.mxu0 %v793
        %v872 = vpop.f32.mrf.mxu0
        %v873 = vadd.f32 %v789, %v872
        %874 = vdwg.mxu0
        %s875 = scalar_lea.vmem %s326, 8
        %876 = vst.msk [vmem:[%s875] sm:$0x3f] %vm815, %v873
      $region64: #{tpu_custom_call.1} parent=47 // pred_fallthru
        _
      %s877 = smul.u32 %s23, %s24
      %s878 = smul.u32 %s23, %s25
      %s879 = smul.u32 2, %s877
      %p880 = scmp.lt.s32.totalorder %s879, 1
      %s881 = scalar_select %p880, %s879, 1
      %p882 = scmp.lt.s32.totalorder %s878, 0
      %s883 = scalar_select %p882, %s878, 0
      %s884 = sadd.s32 %s883, %s881
      %s885 = smul.addr %s884, 8
      %s886 = scalar_lea.vmem %s7, %s885
      // Predicated region
      $region65: #{tpu_custom_call.1} parent=47 // pred_check
        %p887 = pneg %p215
      $region66: #{tpu_custom_call.1} parent=47 // pred_check_branch
        %889 = sbr.rel (%p887) target = $region68
      $region67: #{tpu_custom_call.1} parent=47 // pred_region
        %s890 = smul.u32 %s23, %s24
        %s891 = smul.u32 %s23, %s25
        %s892 = smul.u32 2, %s890
      $region68: #{tpu_custom_call.1} parent=47 // pred_fallthru
        _
    $region48: #{tpu_custom_call.1} parent=5 // pred_fallthru
      _
    %p893 = scmp.le.s32.totalorder 2, %s13
    // Predicated region
    $region69: #{tpu_custom_call.1} parent=5 // pred_check
      %p894 = pneg %p893
    $region70: #{tpu_custom_call.1} parent=5 // pred_check_branch
      %896 = sbr.rel (%p894) target = $region72
    $region71: #{tpu_custom_call.1} parent=5 // pred_region
      %s897 = ssub.s32 %s13, 2
      // Predicated region
      $region73: #{tpu_custom_call.1} parent=71 // pred_check
        %p898 = pneg %p221
      $region74: #{tpu_custom_call.1} parent=71 // pred_check_branch
        %900 = sbr.rel (%p898) target = $region76
      $region75: #{tpu_custom_call.1} parent=71 // pred_region
        %s901 = smul.u32 %s26, %s27
        %s902 = smul.u32 %s26, %s28
        %s903 = smul.u32 2, %s901
        %p904 = scmp.lt.s32.totalorder %s903, 1
        %s905 = scalar_select %p904, %s903, 1
        %p906 = scmp.lt.s32.totalorder %s902, 0
        %s907 = scalar_select %p906, %s902, 0
        %s908 = sadd.s32 %s907, %s905
        %s909 = smul.addr %s908, 8
        %s910 = scalar_lea.vmem %s7, %s909
      $region76: #{tpu_custom_call.1} parent=71 // pred_fallthru
        _
    $region72: #{tpu_custom_call.1} parent=5 // pred_fallthru
      _
  $region6: #{tpu_custom_call.1} parent=0 // loop_footer
    %s17 = sadd.s32 1, %s13
  $region7: #{tpu_custom_call.1} parent=0 // loop_footer_branch
    %12 = sbr.rel target = $region3
  $region8: #{tpu_custom_call.1} parent=0 // loop_exit
    _

</llo_original>
